<compile_context>
chip_gen: v5e
topology: v5e:2x2
jax: 0.10.0
libtpu: 0.0.40
codegen_flags: <defaults>
</compile_context>

<pallas_src>
import functools

import jax
import jax.numpy as jnp
from jax.experimental import pallas as pl
from jax.experimental.pallas import tpu as pltpu


_LANE = 128


def _round_up(v: int, m: int) -> int:
    return ((v + m - 1) // m) * m


def _round_down(v: int, m: int) -> int:
    return (v // m) * m


def _sublane_pack(dtype) -> int:
    # 8 sublanes of 32-bit; packed dtypes (bf16/int8) pack 2x/4x rows per tile.
    itemsize = jnp.dtype(dtype).itemsize
    return 8 * max(1, 4 // itemsize)


@functools.lru_cache(maxsize=None)
def _vmem_budget():
    """(per-input-buffer bytes, vmem_limit_bytes) sized for the local TPU gen."""
    vmem_capacity = 128 << 20          # v5e / v6e physical VMEM per core
    try:
        info = pltpu.get_tpu_info()
        vmem_capacity = int(getattr(info, "vmem_capacity_bytes", vmem_capacity))
    except Exception:
        pass                           # unknown backend: keep conservative default
    if vmem_capacity <= (80 << 20):
        # v7x-class (64 MiB per TC): bigger tiles for the ~3.2 TB/s HBM, but
        # leave headroom (2x double-buffered input + output + accumulator).
        return 10 << 20, int(vmem_capacity * 7 // 10)
    # v5e / v6e (128 MiB physical): raise the scoped-VMEM default explicitly.
    return 8 << 20, 64 << 20


def _choose_tiles(r: int, l: int, dtype, buffer_bytes: int):
    """Pick (row_tile, l_tile) for the collapsed (R, L) layout.

    Footprints are padding-aware: the L dim pads to 128 lanes and the row dim
    to the dtype's sublane pack inside VMEM.
    """
    itemsize = jnp.dtype(dtype).itemsize
    sub = _sublane_pack(dtype)
    padded_l = _round_up(l, _LANE)

    # Rows that fit in one buffer if we keep the full L extent per block.
    rows_full_l = buffer_bytes // (padded_l * itemsize)

    if rows_full_l >= min(sub, r):
        # Whole L fits: contiguous HBM slab per block; grow rows to fill budget.
        tl = l
        if r <= sub:
            br = r                                  # single, full-extent block
        else:
            max_rows = _round_down(rows_full_l, sub)
            if max_rows >= r:
                # Everything fits in one block; split rows in two (when legal)
                # so v7x's second TensorCore gets a parallel block to stream.
                br = _round_up(-(-r // 2), sub) if r >= 2 * sub else r
            else:
                br = max_rows
    else:
        # Long-L regime: one sublane pack of rows, tl fills the buffer budget.
        br = r if r < sub else sub
        padded_br = _round_up(br, sub)
        tl = _round_down(buffer_bytes // (padded_br * itemsize), _LANE)
        tl = max(_LANE, min(tl, padded_l))
        if tl >= l:
            tl = l
    return br, tl


def _make_gap_kernel(l_total: int, tl: int, num_l_blocks: int):
    """Mean-over-L reduction kernel for static (L, L-tile, #L-blocks)."""
    inv_l = 1.0 / float(l_total)
    last = num_l_blocks - 1
    valid_tail = l_total - last * tl        # valid lanes in the last L block
    ragged = valid_tail != tl

    def kernel(x_ref, o_ref, acc_ref):
        k = pl.program_id(1)

        @pl.when(k == 0)
        def _init():
            acc_ref[...] = jnp.zeros_like(acc_ref)

        if not ragged:
            # Common path: f32 accumulation fused into the cross-lane reduce.
            acc_ref[...] += jnp.sum(
                x_ref[...], axis=-1, keepdims=True, dtype=jnp.float32)
        else:
            @pl.when(k != last)
            def _interior():
                acc_ref[...] += jnp.sum(
                    x_ref[...], axis=-1, keepdims=True, dtype=jnp.float32)

            @pl.when(k == last)
            def _tail():
                # Lane-only iota mask; only the (single) ragged tail block pays.
                x = x_ref[...]
                lane = jax.lax.broadcasted_iota(jnp.int32, (1, tl), 1)
                x = jnp.where(lane < valid_tail, x, jnp.array(0, x.dtype))
                acc_ref[...] += jnp.sum(
                    x, axis=-1, keepdims=True, dtype=jnp.float32)

        @pl.when(k == last)
        def _finalize():
            o_ref[...] = (acc_ref[...] * inv_l).astype(o_ref.dtype)

    return kernel


@functools.partial(jax.jit, static_argnames=("flatten", "block_rows", "block_l"))
def fast_global_avg_pool1d(x, flatten=False, block_rows=None, block_l=None):
    """Pallas TPU implementation of FastGlobalAvgPool1d.forward.

    x: (N, C, *spatial). Trailing spatial dims are flattened like the PyTorch
    `x.view(N, C, -1)`. Returns (N, C) if flatten else (N, C, 1).
    """
    n, c = x.shape[0], x.shape[1]
    l = 1
    for d in x.shape[2:]:
        l *= d
    if l == 0:
        raise ValueError("FastGlobalAvgPool1d: empty spatial extent (L == 0).")

    r = n * c
    x2 = x.reshape(r, l)                    # dense-sublane collapsed layout

    buffer_bytes, vmem_limit = _vmem_budget()
    br, tl = _choose_tiles(r, l, x.dtype, buffer_bytes)
    if block_rows is not None:
        br = block_rows
    if block_l is not None:
        tl = block_l

    num_l_blocks = pl.cdiv(l, tl)
    grid = (pl.cdiv(r, br), num_l_blocks)
    itemsize = jnp.dtype(x.dtype).itemsize

    out = pl.pallas_call(
        _make_gap_kernel(l, tl, num_l_blocks),
        out_shape=jax.ShapeDtypeStruct((r, 1), x.dtype),
        grid_spec=pltpu.PrefetchScalarGridSpec(
            num_scalar_prefetch=0,
            grid=grid,
            in_specs=[pl.BlockSpec((br, tl), lambda i, k: (i, k))],
            out_specs=pl.BlockSpec((br, 1), lambda i, k: (i, 0)),
            scratch_shapes=[pltpu.VMEM((br, 1), jnp.float32)],
        ),
        compiler_params=pltpu.CompilerParams(
            dimension_semantics=("parallel", "arbitrary"),
            vmem_limit_bytes=vmem_limit,
        ),
        cost_estimate=pl.CostEstimate(
            flops=r * l,
            transcendentals=0,
            bytes_accessed=r * l * itemsize + r * itemsize,
        ),
    )(x2)

    if flatten:
        return out.reshape(n, c)
    return out.reshape(n, c, 1)


if __name__ == "__main__":
    key = jax.random.PRNGKey(0)
    # Small NCL input consistent with the module: batch=2, channels=4, len=16.
    x = jax.random.normal(key, (2, 4, 16), dtype=jnp.float32)

    out = jax.block_until_ready(fast_global_avg_pool1d(x, flatten=False))
    out_flat = jax.block_until_ready(fast_global_avg_pool1d(x, flatten=True))

    ref = jnp.mean(x, axis=-1)
    assert out.shape == (2, 4, 1)
    assert out_flat.shape == (2, 4)
    assert jnp.allclose(out[..., 0], ref, atol=1e-5)
    assert jnp.allclose(out_flat, ref, atol=1e-5)

    # Tiled streaming path: ragged row blocks + ragged last L block.
    x2 = jax.random.normal(jax.random.PRNGKey(1), (9, 24, 1000),
                           dtype=jnp.float32)
    out2 = jax.block_until_ready(
        fast_global_avg_pool1d(x2, flatten=True, block_l=256))
    ref2 = jnp.mean(x2, axis=-1)
    assert out2.shape == (9, 24)
    assert jnp.allclose(out2, ref2, atol=1e-4, rtol=1e-5)

    # Packed-dtype path (bf16): f32 accumulation, two parallel row blocks.
    x3 = jax.random.normal(jax.random.PRNGKey(2), (4, 8, 300),
                           dtype=jnp.bfloat16)
    out3 = jax.block_until_ready(fast_global_avg_pool1d(x3, flatten=True))
    ref3 = jnp.mean(x3.astype(jnp.float32), axis=-1)
    assert out3.shape == (4, 8)
    assert jnp.allclose(out3.astype(jnp.float32), ref3, atol=2e-2)

    print("KERNEL_OK")
</pallas_src>

<mosaic_0001>
module attributes {stable_mosaic.version = 11 : i64} {
  func.func @kernel(%arg0: i32, %arg1: i32, %arg2: memref<8x16xf32, #tpu.memory_space<vmem>>, %arg3: memref<8x1xf32, #tpu.memory_space<vmem>>, %arg4: memref<8x1xf32, #tpu.memory_space<vmem>>) attributes {dimension_semantics = [#tpu.dimension_semantics<parallel>, #tpu.dimension_semantics<arbitrary>], iteration_bounds = array<i64: 1, 1>, scalar_prefetch = 0 : i64, scratch_operands = 1 : i64, tpu.core_type = #tpu.core_type<tc>, window_params = [{transform_indices = @transform_0, window_bounds = array<i64: 8, 16>}, {transform_indices = @transform_1, window_bounds = array<i64: 8, 1>}]} {
    %c0_i32 = arith.constant 0 : i32
    %0 = arith.cmpi eq, %arg1, %c0_i32 : i32
    %1 = arith.extui %0 : i1 to i32
    %c0_i32_0 = arith.constant 0 : i32
    %2 = arith.cmpi ne, %1, %c0_i32_0 : i32
    scf.if %2 {
      %cst_8 = arith.constant 0.000000e+00 : f32
      %12 = vector.broadcast %cst_8 : f32 to vector<8x1xf32>
      %c0_9 = arith.constant 0 : index
      %c0_10 = arith.constant 0 : index
      %13 = vector.load %arg4[%c0_9, %c0_10] : memref<8x1xf32, #tpu.memory_space<vmem>>, vector<8x1xf32>
      tpu.vector_store %arg4[%c0_9, %c0_10], %12 {strides = array<i32>} : memref<8x1xf32, #tpu.memory_space<vmem>>, vector<8x1xf32>,
    } else {
    }
    %c0 = arith.constant 0 : index
    %c0_1 = arith.constant 0 : index
    %3 = vector.load %arg4[%c0, %c0_1] : memref<8x1xf32, #tpu.memory_space<vmem>>, vector<8x1xf32>
    %c0_2 = arith.constant 0 : index
    %c0_3 = arith.constant 0 : index
    %4 = vector.load %arg2[%c0_2, %c0_3] : memref<8x16xf32, #tpu.memory_space<vmem>>, vector<8x16xf32>
    %cst = arith.constant dense<0.000000e+00> : vector<8xf32>
    %5 = vector.multi_reduction <add>, %4, %cst [1] : vector<8x16xf32> to vector<8xf32>
    %6 = vector.shape_cast %5 : vector<8xf32> to vector<8x1xf32>
    %7 = arith.addf %3, %6 : vector<8x1xf32>
    %c0_4 = arith.constant 0 : index
    %c0_5 = arith.constant 0 : index
    %8 = vector.load %arg4[%c0_4, %c0_5] : memref<8x1xf32, #tpu.memory_space<vmem>>, vector<8x1xf32>
    tpu.vector_store %arg4[%c0_4, %c0_5], %7 {strides = array<i32>} : memref<8x1xf32, #tpu.memory_space<vmem>>, vector<8x1xf32>,
    %c0_i32_6 = arith.constant 0 : i32
    %9 = arith.cmpi eq, %arg1, %c0_i32_6 : i32
    %10 = arith.extui %9 : i1 to i32
    %c0_i32_7 = arith.constant 0 : i32
    %11 = arith.cmpi ne, %10, %c0_i32_7 : i32
    scf.if %11 {
      %c0_8 = arith.constant 0 : index
      %c0_9 = arith.constant 0 : index
      %12 = vector.load %arg4[%c0_8, %c0_9] : memref<8x1xf32, #tpu.memory_space<vmem>>, vector<8x1xf32>
      %cst_10 = arith.constant 6.250000e-02 : f32
      %13 = vector.broadcast %cst_10 : f32 to vector<8x1xf32>
      %14 = arith.mulf %12, %13 : vector<8x1xf32>
      %c0_11 = arith.constant 0 : index
      %c0_12 = arith.constant 0 : index
      %15 = vector.load %arg3[%c0_11, %c0_12] : memref<8x1xf32, #tpu.memory_space<vmem>>, vector<8x1xf32>
      tpu.vector_store %arg3[%c0_11, %c0_12], %14 {strides = array<i32>} : memref<8x1xf32, #tpu.memory_space<vmem>>, vector<8x1xf32>,
    } else {
    }
    return
  }
  func.func @transform_0(%arg0: i32, %arg1: i32) -> (i32, i32) {
    %c0_i32 = arith.constant 0 : i32
    return %arg0, %arg1 : i32, i32
  }
  func.func @transform_1(%arg0: i32, %arg1: i32) -> (i32, i32) {
    %c0_i32 = arith.constant 0 : i32
    %c0_i32_0 = arith.constant 0 : i32
    return %arg0, %c0_i32 : i32, i32
  }
}

</mosaic_0001>

<llo_original>
// kernel: fast_global_avg_pool1d.1
$region0: #{fast_global_avg_pool1d.1}
  #allocation0 [shape = 'u32[]', space=smem, size = 0x4, offset = 0x4, fixed_abs, tag = 'smem constant byte address 0x4 - core index']
  #allocation1 [shape = 'u32[72,128]{1,0:T(1,128)}', space=vmem, size = 0x9000, scoped, tag = 'internal scratch']
  #allocation2 [shape = 'f32[8,1]{1,0:T(8,128)}', space=vmem, size = 0x1000, scoped, tag = 'scratch operand']
  %s0 = inlined_call_operand.hbm [shape: f32[8,16], index: 0, kind: input, shape index: {}]
  %s1 = inlined_call_operand.vmem [shape: f32[8,1], index: 1, kind: output, shape index: {}]
  %s2 = sld [smem:[#allocation0]]
  $region26: #{fast_global_avg_pool1d.1} parent=0
    _
  %s4 = ssub.s32 1, %s2
  %s5 = scalar_select 0, %s4, %s2
  $region1: #{fast_global_avg_pool1d.1} parent=0
    #allocation3 [shape = 'u8[4096]{0}', space=vmem, size = 0x1000, scoped, tag = 'input window, operand 0, single buffered']
    #allocation4 [shape = 's32[1]{0}', space=sflag, size = 0x4, scoped, tag = 'scoped memory for fast_global_avg_pool1d.1']
    %6 = vsyncpa [#allocation4], 0
    // Predicated region
    $region2: #{fast_global_avg_pool1d.1} parent=1 // pred_check
      _
    $region3: #{fast_global_avg_pool1d.1} parent=1 // pred_check_branch
      %8 = sbr.rel (0) target = $region5
    $region4: #{fast_global_avg_pool1d.1} parent=1 // pred_region
      %10 = vsyncadd [#allocation4], 0
      %s12 = sshll.u32 %s0, 4
      %s13 = int_to_ptr.hbm [resolvable:$true] %s12
      %s14 = sshll.u32 [#allocation3], 4
      %s15 = int_to_ptr.vmem [resolvable:$true] %s14
      %17 = dma.hbm_to_vmem [thread:$0]  %s13, 128, %s15, [#allocation4]
    $region5: #{fast_global_avg_pool1d.1} parent=1 // pred_fallthru
      _
    // Predicated region
    $region6: #{fast_global_avg_pool1d.1} parent=1 // pred_check
      _
    $region7: #{fast_global_avg_pool1d.1} parent=1 // pred_check_branch
      %19 = sbr.rel (0) target = $region9
    $region8: #{fast_global_avg_pool1d.1} parent=1 // pred_region
      %21 = dma.done [#allocation4], 128
    $region9: #{fast_global_avg_pool1d.1} parent=1 // pred_fallthru
      _
    %p22 = scmp.eq.s32.totalorder 0, 0
    // Predicated region
    $region10: #{fast_global_avg_pool1d.1} parent=1 // pred_check
      %p23 = pneg %p22
    $region11: #{fast_global_avg_pool1d.1} parent=1 // pred_check_branch
      %25 = sbr.rel (%p23) target = $region13
    $region12: #{fast_global_avg_pool1d.1} parent=1 // pred_region
      %vm26 = vcmask 7168
      %27 = vst.msk [vmem:[#allocation2] sm:$0xff] %vm26, 0.0
    $region13: #{fast_global_avg_pool1d.1} parent=1 // pred_fallthru
      _
    %v28 = vld [vmem:[#allocation2] sm:$0xff]
    %v29 = vld [vmem:[#allocation3] sm:$0xff]
    %vm30 = vcmask 130048
    %v31 = vsel %vm30, %v29, 0.0
    %32 = vadd.xlane.f32.xlu0 %v31
    %v33 = vpop.xlane.xlu0 %32
    %v34 = vadd.f32 %v28, %v33
    %vm35 = vcmask 7168
    %36 = vst.msk [vmem:[#allocation2] sm:$0xff] %vm35, %v34
    // Predicated region
    $region14: #{fast_global_avg_pool1d.1} parent=1 // pred_check
      %p37 = pneg %p22
    $region15: #{fast_global_avg_pool1d.1} parent=1 // pred_check_branch
      %39 = sbr.rel (%p37) target = $region17
    $region16: #{fast_global_avg_pool1d.1} parent=1 // pred_region
      %v40 = vld [vmem:[#allocation2] sm:$0xff]
      %v41 = vmul.f32 %v40, 0.0625
      %42 = vst.msk [vmem:[%s1] sm:$0xff] %vm35, %v41
    $region17: #{fast_global_avg_pool1d.1} parent=1 // pred_fallthru
      _
    // Predicated region
    $region18: #{fast_global_avg_pool1d.1} parent=1 // pred_check
      _
    $region19: #{fast_global_avg_pool1d.1} parent=1 // pred_check_branch
      %44 = sbr.rel (0) target = $region21
    $region20: #{fast_global_avg_pool1d.1} parent=1 // pred_region
      _
    $region21: #{fast_global_avg_pool1d.1} parent=1 // pred_fallthru
      _
    // Predicated region
    $region22: #{fast_global_avg_pool1d.1} parent=1 // pred_check
      _
    $region23: #{fast_global_avg_pool1d.1} parent=1 // pred_check_branch
      %46 = sbr.rel (0) target = $region25
    $region24: #{fast_global_avg_pool1d.1} parent=1 // pred_region
      _
    $region25: #{fast_global_avg_pool1d.1} parent=1 // pred_fallthru
      _
    %47 = vsyncpa [#allocation4], 1

</llo_original>
